<compile_context>
chip_gen: v5e
topology: v5e:2x2
jax: 0.10.0
libtpu: 0.0.40
codegen_flags: <defaults>
</compile_context>

<pallas_src>
import jax
import jax.numpy as jnp
import numpy as np
from jax.experimental import pallas as pl
from jax.experimental.pallas import tpu as pltpu

NEG_SLOPE = 0.2  # default negative_slope


def _round_up(x, m):
    return ((x + m - 1) // m) * m


# ---------------- Pallas kernels ----------------

def _fused_proj_kernel(x_ref, w_ref, b_ref, o_ref):
    # out = x @ W + b   (W already [in, out]; bias row-broadcast)
    o_ref[...] = (jnp.dot(x_ref[...], w_ref[...],
                          preferred_element_type=jnp.float32) + b_ref[...])


def _proj_kernel(x_ref, w_ref, o_ref):
    # out = x @ W       (W already [in, out])
    o_ref[...] = jnp.dot(x_ref[...], w_ref[...],
                         preferred_element_type=jnp.float32)


def _agg_kernel(dst_ids_ref, e_ref, msg_ref, expand_ref, pool_ref,
                scale_ref, offset_ref, wagg_ref, bagg_ref, dstfc_ref,
                o_ref, acc_ref):
    # grid = (dst-node tiles [parallel], edge tiles [arbitrary / reduction])
    i = pl.program_id(0)
    j = pl.program_id(1)
    tn = acc_ref.shape[0]
    te = dst_ids_ref.shape[1]

    @pl.when(j == 0)
    def _():
        acc_ref[...] = jnp.zeros_like(acc_ref)

    # expand per-edge attention [te, H] to [te, H*F] lanes via tiny 0/1 matmul
    a_full = jnp.dot(e_ref[...], expand_ref[...],
                     preferred_element_type=jnp.float32)
    weighted = msg_ref[...] * a_full                              # [te, H*F]

    # one-hot scatter-by-dst expressed as an MXU matmul:
    # sel[v, e] = (dst[e] == global node id of row v)
    node_ids = jax.lax.broadcasted_iota(jnp.int32, (tn, te), 0) + i * tn
    sel = (node_ids == dst_ids_ref[...]).astype(jnp.float32)      # [tn, te]
    acc_ref[...] += jnp.dot(sel, weighted,
                            preferred_element_type=jnp.float32)

    @pl.when(j == pl.num_programs(1) - 1)
    def _():
        h = acc_ref[...]                                          # [tn, H*F]
        # per-head layer-norm with no reshapes: pool over F, expand back
        mean = jnp.dot(jnp.dot(h, pool_ref[...],
                               preferred_element_type=jnp.float32),
                       expand_ref[...], preferred_element_type=jnp.float32)
        d = h - mean
        var = jnp.dot(jnp.dot(d * d, pool_ref[...],
                              preferred_element_type=jnp.float32),
                      expand_ref[...],
                      preferred_element_type=jnp.float32) + 1e-9
        hn = d * jax.lax.rsqrt(var) * scale_ref[...] + offset_ref[...]
        # agg_fc + dst_fc residual (dst_fc tile already carries its bias)
        o_ref[...] = (jnp.dot(hn, wagg_ref[...],
                              preferred_element_type=jnp.float32)
                      + bagg_ref[...] + dstfc_ref[...])


# ---------------- wrappers ----------------

def fused_node_projection(x, w_cat, b_cat, tm):
    n_pad, k = x.shape
    t = w_cat.shape[1]
    return pl.pallas_call(
        _fused_proj_kernel,
        out_shape=jax.ShapeDtypeStruct((n_pad, t), jnp.float32),
        grid=(n_pad // tm,),
        in_specs=[pl.BlockSpec((tm, k), lambda i: (i, 0)),
                  pl.BlockSpec((k, t), lambda i: (0, 0)),
                  pl.BlockSpec((1, t), lambda i: (0, 0))],
        out_specs=pl.BlockSpec((tm, t), lambda i: (i, 0)),
        compiler_params=pltpu.CompilerParams(
            dimension_semantics=("parallel",)),
    )(x, w_cat, b_cat)


def edge_projection(x, w, te):
    e_pad, k = x.shape
    h = w.shape[1]
    return pl.pallas_call(
        _proj_kernel,
        out_shape=jax.ShapeDtypeStruct((e_pad, h), jnp.float32),
        grid=(e_pad // te,),
        in_specs=[pl.BlockSpec((te, k), lambda i: (i, 0)),
                  pl.BlockSpec((k, h), lambda i: (0, 0))],
        out_specs=pl.BlockSpec((te, h), lambda i: (i, 0)),
        compiler_params=pltpu.CompilerParams(
            dimension_semantics=("parallel",)),
    )(x, w)


def aggregate_and_output(dst_ids, e_att, msgs, expand, pool, scale_flat,
                         offset_flat, wagg_t, bagg, dstfc, tm, te):
    n_pad, hf = dstfc.shape
    e_pad = msgs.shape[0]
    h = e_att.shape[1]
    return pl.pallas_call(
        _agg_kernel,
        out_shape=jax.ShapeDtypeStruct((n_pad, hf), jnp.float32),
        grid=(n_pad // tm, e_pad // te),
        in_specs=[pl.BlockSpec((1, te), lambda i, j: (0, j)),     # dst ids
                  pl.BlockSpec((te, h), lambda i, j: (j, 0)),     # edge attn
                  pl.BlockSpec((te, hf), lambda i, j: (j, 0)),    # gathered msgs
                  pl.BlockSpec((h, hf), lambda i, j: (0, 0)),     # expand
                  pl.BlockSpec((hf, h), lambda i, j: (0, 0)),     # pool (mean)
                  pl.BlockSpec((1, hf), lambda i, j: (0, 0)),     # scale
                  pl.BlockSpec((1, hf), lambda i, j: (0, 0)),     # offset
                  pl.BlockSpec((hf, hf), lambda i, j: (0, 0)),    # agg_fc W^T
                  pl.BlockSpec((1, hf), lambda i, j: (0, 0)),     # agg_fc b
                  pl.BlockSpec((tm, hf), lambda i, j: (i, 0))],   # dst_fc out
        out_specs=pl.BlockSpec((tm, hf), lambda i, j: (i, 0)),
        scratch_shapes=[pltpu.VMEM((tm, hf), jnp.float32)],
        compiler_params=pltpu.CompilerParams(
            dimension_semantics=("parallel", "arbitrary")),
    )(dst_ids, e_att, msgs, expand, pool, scale_flat, offset_flat,
      wagg_t, bagg, dstfc)


def gipa_wide_conv_forward(params, feat_src, feat_edge, src_idx, dst_idx):
    H, F = params["n_heads"], params["out_feats"]
    HF = H * F
    N, K = feat_src.shape
    E = feat_edge.shape[0]
    f32 = jnp.float32

    # ---- tile sizes (VMEM-safe on v5e/v6e/v7x: every per-step block is tiny
    #      relative to the default scoped-VMEM budget even double-buffered)
    TM = min(256, _round_up(N, 8))         # dst-node row tile
    N_pad = _round_up(N, TM)
    TE = min(512, _round_up(E, 128))       # edge tile (multiple of 128 lanes)
    E_pad = _round_up(E, TE)

    # ---- weight prep: pre-transpose to [in, out] and fuse every feat_src
    #      consumer (src_fc, attn_src_fc, attn_dst_fc, dst_fc) into one matmul
    w_cat = jnp.concatenate(
        [params["src_fc_w"], params["attn_src_fc_w"],
         params["attn_dst_fc_w"], params["dst_fc_w"]], axis=0).T.astype(f32)
    b_cat = jnp.concatenate(
        [jnp.zeros((HF + 2 * H,), f32),
         params["dst_fc_b"].astype(f32)]).reshape(1, -1)

    # ---- node-side fused projection (one pass over feat_src)
    x_pad = jnp.pad(feat_src, ((0, N_pad - N), (0, 0)))
    proj = fused_node_projection(x_pad, w_cat, b_cat, TM)   # [N_pad, 2HF+2H]
    fsrc_fc = proj[:, :HF]
    asrc = proj[:, HF:HF + H]
    adst = proj[:, HF + H:HF + 2 * H]
    dstfc = proj[:, HF + 2 * H:]                            # includes bias

    # ---- edge attention projection
    fe_pad = jnp.pad(feat_edge, ((0, E_pad - E), (0, 0)))
    aedge = edge_projection(fe_pad, params["attn_edge_fc_w"].T.astype(f32), TE)

    # ---- per-edge attention + gathers (jnp glue; [E, H] elementwise work)
    src_g = jnp.pad(src_idx, (0, E_pad - E))
    dst_g = jnp.pad(dst_idx, (0, E_pad - E))
    e_att = asrc[src_g] + adst[dst_g] + aedge
    e_att = jnp.where(e_att > 0, e_att, NEG_SLOPE * e_att)  # LeakyReLU(0.2)
    valid = jnp.arange(E_pad) < E
    e_att = jnp.where(valid[:, None], e_att, 0.0)
    # edge_agg_mode='both_softmax' -> else-branch: a = e (no edge_softmax);
    # norm='none', edge_drop=0 (eval): all edges kept, no extra scaling.
    # TODO(synk): 'single_softmax' (edge_softmax) and training-time edge_drop
    # branches are not exercised by the default config and are not implemented.
    msgs = fsrc_fc[src_g]                                   # [E_pad, HF] gather
    dst_ids = jnp.where(valid, dst_g, -1).astype(jnp.int32).reshape(1, E_pad)

    # ---- constants for the fused aggregation / layernorm / output kernel
    head_of = jnp.arange(HF) // F
    expand = (head_of[None, :] == jnp.arange(H)[:, None]).astype(f32)  # [H,HF]
    pool = expand.T / np.float32(F)                                    # [HF,H]
    wagg_t = params["agg_fc_w"].T.astype(f32)
    bagg = params["agg_fc_b"].reshape(1, HF).astype(f32)
    scale_flat = params["scale"].reshape(1, HF).astype(f32)
    offset_flat = params["offset"].reshape(1, HF).astype(f32)

    out = aggregate_and_output(dst_ids, e_att, msgs, expand, pool,
                               scale_flat, offset_flat, wagg_t, bagg,
                               dstfc, TM, TE)               # [N_pad, HF]
    # activation=None
    return out[:N].reshape(N, H, F)


# ---------------- pure-JAX reference (for sanity check) ----------------

def _reference(params, feat_src, feat_edge, src_idx, dst_idx):
    P = jax.lax.Precision.HIGHEST
    H, F = params["n_heads"], params["out_feats"]
    N = feat_src.shape[0]
    fsrc = jnp.einsum("nk,ok->no", feat_src, params["src_fc_w"],
                      precision=P).reshape(N, H, F)
    asrc = jnp.einsum("nk,hk->nh", feat_src, params["attn_src_fc_w"], precision=P)
    adst = jnp.einsum("nk,hk->nh", feat_src, params["attn_dst_fc_w"], precision=P)
    aedg = jnp.einsum("ek,hk->eh", feat_edge, params["attn_edge_fc_w"], precision=P)
    e = asrc[src_idx] + adst[dst_idx] + aedg
    e = jnp.where(e > 0, e, NEG_SLOPE * e)
    msg = fsrc[src_idx] * e[:, :, None]
    agg = jnp.zeros((N, H, F), jnp.float32).at[dst_idx].add(msg)
    mean = agg.mean(-1, keepdims=True)
    var = ((agg - mean) ** 2).mean(-1, keepdims=True) + 1e-9
    hn = (agg - mean) * params["scale"] * jax.lax.rsqrt(var) + params["offset"]
    out = jnp.einsum("nk,ok->no", hn.reshape(N, H * F), params["agg_fc_w"],
                     precision=P) + params["agg_fc_b"]
    dstfc = jnp.einsum("nk,ok->no", feat_src, params["dst_fc_w"],
                       precision=P) + params["dst_fc_b"]
    return out.reshape(N, H, F) + dstfc.reshape(N, H, F)


# ---------------- main ----------------

if __name__ == "__main__":
    key = jax.random.PRNGKey(0)
    node_feats, edge_feats, out_feats, n_heads = 32, 8, 16, 4
    N, E = 16, 48
    gain = 2.0 ** 0.5  # nn.init.calculate_gain('relu')

    def xavier_normal(k, shape):
        fan_out, fan_in = shape
        std = gain * (2.0 / (fan_in + fan_out)) ** 0.5
        return std * jax.random.normal(k, shape, jnp.float32)

    keys = jax.random.split(key, 12)
    HF = out_feats * n_heads
    params = {
        "n_heads": n_heads, "out_feats": out_feats,
        "src_fc_w": xavier_normal(keys[0], (HF, node_feats)),
        "attn_src_fc_w": xavier_normal(keys[1], (n_heads, node_feats)),
        "attn_dst_fc_w": xavier_normal(keys[2], (n_heads, node_feats)),
        "attn_edge_fc_w": xavier_normal(keys[3], (n_heads, edge_feats)),
        "dst_fc_w": xavier_normal(keys[4], (HF, node_feats)),
        "dst_fc_b": jax.random.uniform(keys[5], (HF,), jnp.float32,
                                       -1.0 / node_feats ** 0.5,
                                       1.0 / node_feats ** 0.5),
        "agg_fc_w": xavier_normal(keys[6], (HF, HF)),
        "agg_fc_b": jax.random.uniform(keys[7], (HF,), jnp.float32,
                                       -1.0 / HF ** 0.5, 1.0 / HF ** 0.5),
        "scale": jnp.ones((1, n_heads, out_feats), jnp.float32),
        "offset": jnp.zeros((1, n_heads, out_feats), jnp.float32),
    }

    feat_src = jax.random.normal(keys[8], (N, node_feats), jnp.float32)
    feat_edge = jax.random.normal(keys[9], (E, edge_feats), jnp.float32)
    src_idx = jax.random.randint(keys[10], (E,), 0, N)
    dst_idx = jax.random.randint(keys[11], (E,), 0, N)

    out = gipa_wide_conv_forward(params, feat_src, feat_edge, src_idx, dst_idx)
    out = jax.block_until_ready(out)

    ref = _reference(params, feat_src, feat_edge, src_idx, dst_idx)
    np.testing.assert_allclose(np.asarray(out), np.asarray(ref),
                               rtol=5e-3, atol=5e-3)
    print("KERNEL_OK")
</pallas_src>

<mosaic_0001>
module attributes {stable_mosaic.version = 11 : i64} {
  func.func @_fused_proj_kernel(%arg0: i32, %arg1: memref<16x32xf32, #tpu.memory_space<vmem>>, %arg2: memref<32x136xf32, #tpu.memory_space<vmem>>, %arg3: memref<1x136xf32, #tpu.memory_space<vmem>>, %arg4: memref<16x136xf32, #tpu.memory_space<vmem>>) attributes {dimension_semantics = [#tpu.dimension_semantics<parallel>], iteration_bounds = array<i64: 1>, scalar_prefetch = 0 : i64, scratch_operands = 0 : i64, tpu.core_type = #tpu.core_type<tc>, window_params = [{transform_indices = @transform_0, window_bounds = array<i64: 16, 32>}, {pipeline_mode = #tpu.pipeline_mode<synchronous>, transform_indices = @transform_1, window_bounds = array<i64: 32, 136>}, {pipeline_mode = #tpu.pipeline_mode<synchronous>, transform_indices = @transform_2, window_bounds = array<i64: 1, 136>}, {transform_indices = @transform_3, window_bounds = array<i64: 16, 136>}]} {
    %c0 = arith.constant 0 : index
    %c0_0 = arith.constant 0 : index
    %0 = vector.load %arg1[%c0, %c0_0] : memref<16x32xf32, #tpu.memory_space<vmem>>, vector<16x32xf32>
    %c0_1 = arith.constant 0 : index
    %c0_2 = arith.constant 0 : index
    %1 = vector.load %arg2[%c0_1, %c0_2] : memref<32x136xf32, #tpu.memory_space<vmem>>, vector<32x136xf32>
    %cst = arith.constant dense<0.000000e+00> : vector<16x136xf32>
    %2 = tpu.matmul %0, %1, %cst {dimension_numbers = #tpu.dot_dimension_numbers<[1], [0], [0], [1], [0, 0, 1, 1], [], []>} : vector<16x32xf32>, vector<32x136xf32>, vector<16x136xf32> -> vector<16x136xf32>
    %c0_3 = arith.constant 0 : index
    %c0_4 = arith.constant 0 : index
    %3 = vector.load %arg3[%c0_3, %c0_4] : memref<1x136xf32, #tpu.memory_space<vmem>>, vector<1x136xf32>
    %4 = vector.broadcast %3 : vector<1x136xf32> to vector<16x136xf32>
    %5 = arith.addf %2, %4 : vector<16x136xf32>
    %c0_5 = arith.constant 0 : index
    %c0_6 = arith.constant 0 : index
    %6 = vector.load %arg4[%c0_5, %c0_6] : memref<16x136xf32, #tpu.memory_space<vmem>>, vector<16x136xf32>
    tpu.vector_store %arg4[%c0_5, %c0_6], %5 {strides = array<i32>} : memref<16x136xf32, #tpu.memory_space<vmem>>, vector<16x136xf32>,
    return
  }
  func.func @transform_0(%arg0: i32) -> (i32, i32) {
    %c0_i32 = arith.constant 0 : i32
    %c0_i32_0 = arith.constant 0 : i32
    return %arg0, %c0_i32 : i32, i32
  }
  func.func @transform_1(%arg0: i32) -> (i32, i32) {
    %c0_i32 = arith.constant 0 : i32
    %c0_i32_0 = arith.constant 0 : i32
    %c0_i32_1 = arith.constant 0 : i32
    return %c0_i32, %c0_i32_0 : i32, i32
  }
  func.func @transform_2(%arg0: i32) -> (i32, i32) {
    %c0_i32 = arith.constant 0 : i32
    %c0_i32_0 = arith.constant 0 : i32
    %c0_i32_1 = arith.constant 0 : i32
    return %c0_i32, %c0_i32_0 : i32, i32
  }
  func.func @transform_3(%arg0: i32) -> (i32, i32) {
    %c0_i32 = arith.constant 0 : i32
    %c0_i32_0 = arith.constant 0 : i32
    return %arg0, %c0_i32 : i32, i32
  }
}

</mosaic_0001>

<llo_original>
// kernel: tpu_custom_call.1
$region0: #{tpu_custom_call.1}
  #allocation0 [shape = 'u32[]', space=smem, size = 0x4, offset = 0x4, fixed_abs, tag = 'smem constant byte address 0x4 - core index']
  #allocation1 [shape = 'u32[72,128]{1,0:T(1,128)}', space=vmem, size = 0x9000, scoped, tag = 'internal scratch']
  %s0 = inlined_call_operand.hbm [shape: f32[16,32], index: 0, kind: input, shape index: {}]
  %s1 = inlined_call_operand.hbm [shape: f32[32,136], index: 1, kind: input, shape index: {}]
  %s2 = inlined_call_operand.hbm [shape: f32[1,136], index: 2, kind: input, shape index: {}]
  %s3 = inlined_call_operand.hbm [shape: f32[16,136], index: 3, kind: output, shape index: {}]
  %s4 = sld [smem:[#allocation0]]
  $region34: #{tpu_custom_call.1} parent=0
    _
  %s6 = ssub.s32 1, %s4
  %s7 = scalar_select 0, %s6, %s4
  $region1: #{tpu_custom_call.1} parent=0
    #allocation2 [shape = 'u8[8192]{0}', space=vmem, size = 0x2000, scoped, tag = 'input window, operand 0, single buffered']
    #allocation3 [shape = 's32[1]{0}', space=sflag, size = 0x4, scoped, tag = 'scoped memory for tpu_custom_call.1']
    #allocation4 [shape = 's32[1]{0}', space=sflag, size = 0x4, scoped, tag = 'scoped memory for tpu_custom_call.1']
    #allocation5 [shape = 'u8[32768]{0}', space=vmem, size = 0x8000, scoped, tag = 'input window, operand 1, single buffered']
    #allocation6 [shape = 's32[1]{0}', space=sflag, size = 0x4, scoped, tag = 'scoped memory for tpu_custom_call.1']
    #allocation7 [shape = 'u8[1024]{0}', space=vmem, size = 0x400, scoped, tag = 'input window, operand 2, single buffered']
    #allocation8 [shape = 'u8[16384]{0}', space=vmem, size = 0x4000, scoped, tag = 'output window, operand 0, single buffered']
    %8 = vsyncpa [#allocation3], 0
    %9 = vsyncpa [#allocation6], 0
    %10 = vsyncpa [#allocation4], 0
    // Predicated region
    $region2: #{tpu_custom_call.1} parent=1 // pred_check
      _
    $region3: #{tpu_custom_call.1} parent=1 // pred_check_branch
      %12 = sbr.rel (0) target = $region5
    $region4: #{tpu_custom_call.1} parent=1 // pred_region
      %14 = vsyncadd [#allocation3], 0
      %s15 = sshll.u32 %s0, 4
      %s16 = int_to_ptr.hbm [resolvable:$true] %s15
      %s17 = sshll.u32 [#allocation2], 4
      %s18 = int_to_ptr.vmem [resolvable:$true] %s17
      %23 = dma.hbm_to_vmem [thread:$0]  %s16, 256, %s18, [#allocation3], 128, 128, 8
    $region5: #{tpu_custom_call.1} parent=1 // pred_fallthru
      _
    // Predicated region
    $region6: #{tpu_custom_call.1} parent=1 // pred_check
      _
    $region7: #{tpu_custom_call.1} parent=1 // pred_check_branch
      %25 = sbr.rel (0) target = $region9
    $region8: #{tpu_custom_call.1} parent=1 // pred_region
      %27 = vsyncadd [#allocation6], 0
      %s28 = sshll.u32 %s1, 4
      %s29 = int_to_ptr.hbm [resolvable:$true] %s28
      %s30 = sshll.u32 [#allocation5], 4
      %s31 = int_to_ptr.vmem [resolvable:$true] %s30
      %36 = dma.hbm_to_vmem [thread:$0]  %s29, 1024, %s31, [#allocation6], 256, 256, 16
    $region9: #{tpu_custom_call.1} parent=1 // pred_fallthru
      _
    // Predicated region
    $region10: #{tpu_custom_call.1} parent=1 // pred_check
      _
    $region11: #{tpu_custom_call.1} parent=1 // pred_check_branch
      %38 = sbr.rel (0) target = $region13
    $region12: #{tpu_custom_call.1} parent=1 // pred_region
      %40 = vsyncadd [#allocation6], 0
      %s42 = sshll.u32 %s2, 4
      %s43 = int_to_ptr.hbm [resolvable:$true] %s42
      %s44 = sshll.u32 [#allocation7], 4
      %s45 = int_to_ptr.vmem [resolvable:$true] %s44
      %47 = dma.hbm_to_vmem [thread:$0]  %s43, 32, %s45, [#allocation6]
    $region13: #{tpu_custom_call.1} parent=1 // pred_fallthru
      _
    // Predicated region
    $region14: #{tpu_custom_call.1} parent=1 // pred_check
      _
    $region15: #{tpu_custom_call.1} parent=1 // pred_check_branch
      %49 = sbr.rel (0) target = $region17
    $region16: #{tpu_custom_call.1} parent=1 // pred_region
      %51 = dma.done [#allocation3], 256
    $region17: #{tpu_custom_call.1} parent=1 // pred_fallthru
      _
    // Predicated region
    $region18: #{tpu_custom_call.1} parent=1 // pred_check
      _
    $region19: #{tpu_custom_call.1} parent=1 // pred_check_branch
      %53 = sbr.rel (0) target = $region21
    $region20: #{tpu_custom_call.1} parent=1 // pred_region
      %55 = dma.done [#allocation6], 1024
    $region21: #{tpu_custom_call.1} parent=1 // pred_fallthru
      _
    // Predicated region
    $region22: #{tpu_custom_call.1} parent=1 // pred_check
      _
    $region23: #{tpu_custom_call.1} parent=1 // pred_check_branch
      %57 = sbr.rel (0) target = $region25
    $region24: #{tpu_custom_call.1} parent=1 // pred_region
      %59 = dma.done [#allocation6], 32
    $region25: #{tpu_custom_call.1} parent=1 // pred_fallthru
      _
    %v60 = vld [vmem:[#allocation2] sm:$0xff]
    %v61 = vld [vmem:[#allocation2 + $0x8] sm:$0xff]
    %v62 = vld [vmem:[#allocation5] sm:$0xff]
    %v63 = vld [vmem:[#allocation5 + $0x8] sm:$0xff]
    %v64 = vld [vmem:[#allocation5 + $0x10] sm:$0xff]
    %v65 = vld [vmem:[#allocation5 + $0x18] sm:$0xff]
    %v66 = vld [vmem:[#allocation5 + $0x20] sm:$0xff]
    %v67 = vld [vmem:[#allocation5 + $0x28] sm:$0xff]
    %v68 = vld [vmem:[#allocation5 + $0x30] sm:$0xff]
    %v69 = vld [vmem:[#allocation5 + $0x38] sm:$0xff]
    %v70 = vld [vmem:[#allocation7] sm:$0x3]
    %v72 = vperm.slane %v70, 0
    %v73 = vperm.slane %v70, 1
    %vm76 = vcmask 261120
    %v78 = vsel %vm76, %v60, 0
    %v81 = vsel %vm76, %v61, 0
    %83 = vmatpush.msra.mxu0 0.0
    %84 = vmatpush.msra.mxu0 0.0
    %85 = vmatpush.msra.mxu0 0.0
    %86 = vmatpush.msra.mxu0 0.0
    %87 = vmatpush.msra.mxu0 0.0
    %88 = vmatpush.msra.mxu0 0.0
    %89 = vmatpush.msra.mxu0 0.0
    %90 = vmatpush.msra.mxu0 0.0
    %91 = vmatpush.msra.mxu0 0.0
    %92 = vmatpush.msra.mxu0 0.0
    %93 = vmatpush.msra.mxu0 0.0
    %94 = vmatpush.msra.mxu0 0.0
    %95 = vmatpush.msra.mxu0 %v68
    %96 = vmatpush.msra.mxu0 %v66
    %97 = vmatpush.msra.mxu0 %v64
    %98 = vmatpush.msra.mxu0 %v62
    %99 = vmatmul.f32.gmra.mxu0 %v78
    %v100 = vpop.f32.mrf.mxu0
    %v101 = vadd.f32 %v72, %v100
    %102 = vmatmul.f32.gmra.mxu0 %v81
    %v103 = vpop.f32.mrf.mxu0
    %v104 = vadd.f32 %v72, %v103
    %105 = vdwg.mxu0
    %106 = vmatpush.msra.mxu0 0.0
    %107 = vmatpush.msra.mxu0 0.0
    %108 = vmatpush.msra.mxu0 0.0
    %109 = vmatpush.msra.mxu0 0.0
    %110 = vmatpush.msra.mxu0 0.0
    %111 = vmatpush.msra.mxu0 0.0
    %112 = vmatpush.msra.mxu0 0.0
    %113 = vmatpush.msra.mxu0 0.0
    %114 = vmatpush.msra.mxu0 0.0
    %115 = vmatpush.msra.mxu0 0.0
    %116 = vmatpush.msra.mxu0 0.0
    %117 = vmatpush.msra.mxu0 0.0
    %118 = vmatpush.msra.mxu0 %v69
    %119 = vmatpush.msra.mxu0 %v67
    %120 = vmatpush.msra.mxu0 %v65
    %121 = vmatpush.msra.mxu0 %v63
    %122 = vmatmul.f32.gmra.mxu0 %v78
    %v123 = vpop.f32.mrf.mxu0
    %v124 = vadd.f32 %v73, %v123
    %125 = vmatmul.f32.gmra.mxu0 %v81
    %v126 = vpop.f32.mrf.mxu0
    %v127 = vadd.f32 %v73, %v126
    %128 = vdwg.mxu0
    %129 = vst [vmem:[#allocation8] sm:$0xff] %v101
    %vm130 = vcmask 64512
    %131 = vst.msk [vmem:[#allocation8 + $0x8] sm:$0xff] %vm130, %v124
    %132 = vst [vmem:[#allocation8 + $0x10] sm:$0xff] %v104
    %133 = vst.msk [vmem:[#allocation8 + $0x18] sm:$0xff] %vm130, %v127
    // Predicated region
    $region26: #{tpu_custom_call.1} parent=1 // pred_check
      _
    $region27: #{tpu_custom_call.1} parent=1 // pred_check_branch
      %135 = sbr.rel (0) target = $region29
    $region28: #{tpu_custom_call.1} parent=1 // pred_region
      %137 = vsyncadd [#allocation4], 0
      %s138 = sshll.u32 [#allocation8], 4
      %s139 = int_to_ptr.vmem [resolvable:$true] %s138
      %s140 = sshll.u32 %s3, 4
      %s141 = int_to_ptr.hbm [resolvable:$true] %s140
      %146 = dma.vmem_to_hbm [thread:$0]  %s139, 512, %s141, [#allocation4], 256, 256, 16
    $region29: #{tpu_custom_call.1} parent=1 // pred_fallthru
      _
    // Predicated region
    $region30: #{tpu_custom_call.1} parent=1 // pred_check
      _
    $region31: #{tpu_custom_call.1} parent=1 // pred_check_branch
      %148 = sbr.rel (0) target = $region33
    $region32: #{tpu_custom_call.1} parent=1 // pred_region
      %150 = dma.done [#allocation4], 512
    $region33: #{tpu_custom_call.1} parent=1 // pred_fallthru
      _
    %151 = vsyncpa [#allocation3], 1
    %152 = vsyncpa [#allocation6], 1
    %153 = vsyncpa [#allocation4], 1

</llo_original>
